<compile_context>
chip_gen: v7x
topology: tpu7x:2x2x1
jax: 0.10.0
libtpu: 0.0.40
codegen_flags: <defaults>
</compile_context>

<pallas_src>
import functools

import jax
import jax.numpy as jnp
from jax import lax
from jax.experimental import pallas as pl
from jax.experimental.pallas import tpu as pltpu


# --------------------------------------------------------------------------
# Small helpers
# --------------------------------------------------------------------------
def _pick_tile(n, candidates=(512, 256, 128)):
    """Largest candidate tile that divides n, else the full axis (n is always a
    multiple of 128 by construction, so the fallback is never hit)."""
    for t in candidates:
        if n % t == 0:
            return t
    return n


def _vmem_capacity():
    """Per-core VMEM capacity; conservative fallback = v7x's 64 MiB per TC."""
    try:
        return int(pltpu.get_tpu_info().vmem_capacity_bytes)
    except Exception:
        return 64 << 20


def _vmem_limit(per_step_bytes, cap):
    """2x for double buffering + slack, clamped to ~75% of physical VMEM."""
    want = 2 * per_step_bytes + (8 << 20)
    hi = max(int(0.75 * cap), 32 << 20)
    return int(min(max(want, 32 << 20), hi))


def _bf16_exp_ok():
    """bf16 EUP exists on v6e / v7x; v5e and older lack bf16 VPU/EUP."""
    try:
        kind = jax.devices()[0].device_kind.lower()
    except Exception:
        return False
    return ("v6" in kind) or ("v7" in kind)


# --------------------------------------------------------------------------
# Kernel 1: fused 1x1-conv projections (q, k, v) - one bf16 MXU matmul.
# --------------------------------------------------------------------------
def _pam_proj_kernel(x_ref, w_ref, b_ref, q_ref, k_ref, v_ref, *, cq):
    x = x_ref[0].astype(jnp.bfloat16)                       # (C, TN) bf16
    # Single stacked matmul: rows [0:Cq]=q, [Cq:2Cq]=k, [2Cq:]=v
    proj = jnp.dot(w_ref[...], x, preferred_element_type=jnp.float32)
    proj = proj + b_ref[...]                                 # f32 bias add
    q_ref[0] = proj[:cq].astype(q_ref.dtype)
    k_ref[0] = proj[cq:2 * cq].astype(k_ref.dtype)
    v_ref[0] = proj[2 * cq:].astype(v_ref.dtype)


# --------------------------------------------------------------------------
# Kernel 2: flash-style position attention + residual.
#   grid = (batch, query tile, key tile); key tile is the reduction axis.
# --------------------------------------------------------------------------
def _pam_attn_kernel(q_ref, k_ref, v_ref, x_ref, gamma_ref, o_ref,
                     m_ref, l_ref, acc_ref, *,
                     tk, resident, exp_dtype, n_real, mask_keys):
    ki = pl.program_id(2)

    @pl.when(ki == 0)
    def _init():
        m_ref[...] = jnp.full_like(m_ref, -jnp.inf)
        l_ref[...] = jnp.zeros_like(l_ref)
        acc_ref[...] = jnp.zeros_like(acc_ref)

    q = q_ref[0]                                             # (Cq, TQ) bf16
    if resident:
        # K / V kept fully resident in VMEM for the whole batch element;
        # slice the current key tile out of the resident buffer.
        koff = pl.multiple_of(ki * tk, 128)
        k = k_ref[0, :, pl.ds(koff, tk)]                     # (Cq, TK) bf16
        v = v_ref[0, :, pl.ds(koff, tk)]                     # (C,  TK) bf16
    else:
        k = k_ref[0]
        v = v_ref[0]

    # energy tile laid out (TK, TQ): s[j, i] = <k[:, j], q[:, i]>
    # (contraction over channel axis 0 of both operands, no explicit .T)
    s = lax.dot_general(k, q, dimension_numbers=(((0,), (0,)), ((), ())),
                        preferred_element_type=jnp.float32)  # (TK, TQ) f32

    if mask_keys:
        # Padded key positions (>= n_real) must not contribute to the softmax.
        key_idx = ki * tk + lax.broadcasted_iota(jnp.int32, s.shape, 0)
        s = jnp.where(key_idx < n_real, s, -jnp.inf)

    m_prev = m_ref[...]                                      # (1, TQ)
    m_new = jnp.maximum(m_prev, jnp.max(s, axis=0, keepdims=True))
    alpha = jnp.exp(m_prev - m_new)                          # (1, TQ) f32
    # bf16 exp on v6e/v7x (EUP is the saturating slot with small Cq); f32 else.
    p = jnp.exp((s - m_new).astype(exp_dtype))               # (TK, TQ)

    l_ref[...] = alpha * l_ref[...] + jnp.sum(
        p.astype(jnp.float32), axis=0, keepdims=True)
    # acc[c, i] += sum_j v[c, j] * p[j, i]  (bf16 MXU inputs, f32 accumulate)
    acc_ref[...] = alpha * acc_ref[...] + jnp.dot(
        v, p.astype(v.dtype), preferred_element_type=jnp.float32)
    m_ref[...] = m_new

    @pl.when(ki == pl.num_programs(2) - 1)
    def _finalize():
        inv_l = pl.reciprocal(l_ref[...], approx=True)       # (1, TQ)
        out = acc_ref[...] * inv_l                           # (C, TQ) f32
        o_ref[0] = (gamma_ref[0] * out + x_ref[0]).astype(o_ref.dtype)


# --------------------------------------------------------------------------
# Wrapper
# --------------------------------------------------------------------------
def pam_module_forward(x_nchw, wq, bq, wk, bk, wv, bv, gamma):
    """x_nchw: (B, C, H, W). wq/wk: (C//8, C), wv: (C, C), biases, gamma scalar."""
    B, C, H, W = x_nchw.shape
    N = H * W
    assert C >= 8, "in_channels must be >= 8 so that query/key channels C//8 >= 1"
    Cq = C // 8

    f32, bf16 = 4, 2
    qkv_dtype = jnp.bfloat16
    cap = _vmem_capacity()

    # Pad the pixel axis to a multiple of 128 so tiles stay lane-dense and the
    # flash tiling never falls back to a single full-N (N, N) energy tile.
    N_pad = ((N + 127) // 128) * 128
    mask_keys = (N_pad != N)

    x_flat = x_nchw.reshape(B, C, N).astype(jnp.float32)
    if mask_keys:
        x_flat = jnp.pad(x_flat, ((0, 0), (0, 0), (0, N_pad - N)))

    # Fused projection weights / biases (bf16 weights -> bf16 MXU path).
    Co = 2 * Cq + C
    w_all = jnp.concatenate(
        [wq.reshape(Cq, C), wk.reshape(Cq, C), wv.reshape(C, C)],
        axis=0).astype(jnp.bfloat16)                         # (Co, C)
    b_all = jnp.concatenate(
        [bq.reshape(Cq), bk.reshape(Cq), bv.reshape(C)],
        axis=0).reshape(Co, 1).astype(jnp.float32)           # (Co, 1)
    gamma1 = jnp.asarray(gamma, jnp.float32).reshape(1,)

    # ---------------- phase 1: fused q/k/v projections ----------------
    TN = _pick_tile(N_pad, (512, 256, 128))
    proj_step_bytes = (C * TN * f32                          # x tile
                       + Co * C * bf16 + Co * f32            # weights + bias
                       + 2 * Cq * TN * bf16 + C * TN * bf16) # q, k, v tiles

    q_all, k_all, v_all = pl.pallas_call(
        functools.partial(_pam_proj_kernel, cq=Cq),
        out_shape=(jax.ShapeDtypeStruct((B, Cq, N_pad), qkv_dtype),
                   jax.ShapeDtypeStruct((B, Cq, N_pad), qkv_dtype),
                   jax.ShapeDtypeStruct((B, C, N_pad), qkv_dtype)),
        grid_spec=pltpu.PrefetchScalarGridSpec(
            num_scalar_prefetch=0,
            grid=(B, N_pad // TN),
            in_specs=[
                pl.BlockSpec((1, C, TN), lambda b, n: (b, 0, n)),  # x
                pl.BlockSpec((Co, C),    lambda b, n: (0, 0)),     # stacked W
                pl.BlockSpec((Co, 1),    lambda b, n: (0, 0)),     # stacked bias
            ],
            out_specs=(
                pl.BlockSpec((1, Cq, TN), lambda b, n: (b, 0, n)),
                pl.BlockSpec((1, Cq, TN), lambda b, n: (b, 0, n)),
                pl.BlockSpec((1, C, TN),  lambda b, n: (b, 0, n)),
            ),
        ),
        compiler_params=pltpu.CompilerParams(
            dimension_semantics=("parallel", "parallel"),
            vmem_limit_bytes=_vmem_limit(proj_step_bytes, cap)),
    )(x_flat, w_all, b_all)

    # ---------------- phase 2: flash attention + residual ----------------
    TQ = _pick_tile(N_pad, (512, 256, 128))
    TK = _pick_tile(N_pad, (1024, 512, 256, 128))  # larger TK amortizes bookkeeping

    # Per-step fixed VMEM (q / x / out tiles, scratch, s/p temporaries).
    fixed_bytes = (2 * Cq * TQ * bf16                        # q tile (2 bufs)
                   + 2 * 2 * C * TQ * f32                    # x + out tiles (2 bufs)
                   + C * TQ * f32 + 2 * 8 * TQ * f32         # acc, m, l scratch
                   + 2 * TK * TQ * f32)                      # s / p temporaries
    # Resident K/V (double-buffered by the pipeline, DMA'd once per batch).
    resident_kv_bytes = 2 * (Cq + C) * N_pad * bf16
    resident = (resident_kv_bytes + fixed_bytes) < int(0.55 * cap)

    if resident:
        k_spec = pl.BlockSpec((1, Cq, N_pad), lambda b, qi, ki: (b, 0, 0))
        v_spec = pl.BlockSpec((1, C, N_pad),  lambda b, qi, ki: (b, 0, 0))
        kv_step_bytes = resident_kv_bytes
    else:
        # TODO(synk): streaming fallback for very large C*N; on v5e consider
        # pipeline_mode=pl.Buffered(3) here to hide exposed K/V DMA.
        k_spec = pl.BlockSpec((1, Cq, TK), lambda b, qi, ki: (b, 0, ki))
        v_spec = pl.BlockSpec((1, C, TK),  lambda b, qi, ki: (b, 0, ki))
        kv_step_bytes = (Cq + C) * TK * bf16

    attn_step_bytes = fixed_bytes + kv_step_bytes
    exp_dtype = jnp.bfloat16 if _bf16_exp_ok() else jnp.float32

    attn_kernel = functools.partial(
        _pam_attn_kernel, tk=TK, resident=resident, exp_dtype=exp_dtype,
        n_real=N, mask_keys=mask_keys)

    out_flat = pl.pallas_call(
        attn_kernel,
        out_shape=jax.ShapeDtypeStruct((B, C, N_pad), jnp.float32),
        grid_spec=pltpu.PrefetchScalarGridSpec(
            num_scalar_prefetch=0,
            grid=(B, N_pad // TQ, N_pad // TK),
            in_specs=[
                pl.BlockSpec((1, Cq, TQ), lambda b, qi, ki: (b, 0, qi)),  # q
                k_spec,                                                   # k
                v_spec,                                                   # v
                pl.BlockSpec((1, C, TQ),  lambda b, qi, ki: (b, 0, qi)),  # x
                pl.BlockSpec(memory_space=pltpu.MemorySpace.SMEM),        # gamma
            ],
            out_specs=pl.BlockSpec((1, C, TQ), lambda b, qi, ki: (b, 0, qi)),
            scratch_shapes=[
                pltpu.VMEM((1, TQ), jnp.float32),   # running max m
                pltpu.VMEM((1, TQ), jnp.float32),   # running denom l
                pltpu.VMEM((C, TQ), jnp.float32),   # fp32 accumulator
            ],
        ),
        compiler_params=pltpu.CompilerParams(
            dimension_semantics=("parallel", "parallel", "arbitrary"),
            vmem_limit_bytes=_vmem_limit(attn_step_bytes, cap)),
    )(q_all, k_all, v_all, x_flat, gamma1)

    if mask_keys:
        out_flat = out_flat[:, :, :N]
    return out_flat.reshape(B, C, H, W)


# --------------------------------------------------------------------------
# Pure-JAX reference (matches the PyTorch PAM_Module forward, fp32)
# --------------------------------------------------------------------------
def _pam_reference(x, wq, bq, wk, bk, wv, bv, gamma):
    B, C, H, W = x.shape
    N = H * W
    xf = x.reshape(B, C, N)
    q = jnp.einsum('oc,bcn->bon', wq, xf) + bq[None, :, None]
    k = jnp.einsum('oc,bcn->bon', wk, xf) + bk[None, :, None]
    v = jnp.einsum('oc,bcn->bon', wv, xf) + bv[None, :, None]
    energy = jnp.einsum('bci,bcj->bij', q, k)
    att = jax.nn.softmax(energy, axis=-1)
    out = jnp.einsum('bcj,bij->bci', v, att)
    return (gamma * out + xf).reshape(B, C, H, W)


if __name__ == "__main__":
    def _run_case(B, C, H, W, seed):
        Cq = C // 8
        key = jax.random.PRNGKey(seed)
        kx, kwq, kbq, kwk, kbk, kwv, kbv = jax.random.split(key, 7)

        x = jax.random.normal(kx, (B, C, H, W), dtype=jnp.float32)
        # nn.Conv2d(C, C//8, 1) weights are (out, in, 1, 1); 1x1 dims dropped.
        wq = jax.random.normal(kwq, (Cq, C), dtype=jnp.float32) * 0.1
        bq = jax.random.normal(kbq, (Cq,),  dtype=jnp.float32) * 0.1
        wk = jax.random.normal(kwk, (Cq, C), dtype=jnp.float32) * 0.1
        bk = jax.random.normal(kbk, (Cq,),  dtype=jnp.float32) * 0.1
        wv = jax.random.normal(kwv, (C, C),  dtype=jnp.float32) * 0.1
        bv = jax.random.normal(kbv, (C,),   dtype=jnp.float32) * 0.1
        # PyTorch __init__ sets gamma = 0; use a nonzero value so the attention
        # path actually contributes to the output.
        gamma = jnp.float32(0.5)

        out = jax.block_until_ready(
            pam_module_forward(x, wq, bq, wk, bk, wv, bv, gamma))
        assert out.shape == (B, C, H, W)
        ref = _pam_reference(x, wq, bq, wk, bk, wv, bv, gamma)
        err = float(jnp.max(jnp.abs(out - ref)))
        assert jnp.allclose(out, ref, atol=2e-2, rtol=2e-2), (
            "max abs err = %f" % err)

    # Lane-aligned N = 16*24 = 384 -> 3 query tiles x 3 key tiles of 128,
    # exercising the online-softmax reduction loop (no padding).
    _run_case(2, 64, 16, 24, 0)
    # Ragged N = 10*13 = 130 -> padded to 256, exercising the key-mask path.
    _run_case(2, 64, 10, 13, 1)

    print("KERNEL_OK")
</pallas_src>

<mosaic_0001>
module attributes {stable_mosaic.version = 11 : i64} {
  func.func @_pam_proj_kernel(%arg0: i32, %arg1: i32, %arg2: memref<1x64x128xf32, #tpu.memory_space<vmem>>, %arg3: memref<80x64xbf16, #tpu.memory_space<vmem>>, %arg4: memref<80x1xf32, #tpu.memory_space<vmem>>, %arg5: memref<1x8x128xbf16, #tpu.memory_space<vmem>>, %arg6: memref<1x8x128xbf16, #tpu.memory_space<vmem>>, %arg7: memref<1x64x128xbf16, #tpu.memory_space<vmem>>) attributes {dimension_semantics = [#tpu.dimension_semantics<parallel>, #tpu.dimension_semantics<parallel>], iteration_bounds = array<i64: 2, 3>, scalar_prefetch = 0 : i64, scratch_operands = 0 : i64, tpu.core_type = #tpu.core_type<tc>, window_params = [{transform_indices = @transform_0, window_bounds = array<i64: 1, 64, 128>}, {pipeline_mode = #tpu.pipeline_mode<synchronous>, transform_indices = @transform_1, window_bounds = array<i64: 80, 64>}, {pipeline_mode = #tpu.pipeline_mode<synchronous>, transform_indices = @transform_2, window_bounds = array<i64: 80, 1>}, {transform_indices = @transform_3, window_bounds = array<i64: 1, 8, 128>}, {transform_indices = @transform_4, window_bounds = array<i64: 1, 8, 128>}, {transform_indices = @transform_5, window_bounds = array<i64: 1, 64, 128>}]} {
    %c0 = arith.constant 0 : index
    %c0_0 = arith.constant 0 : index
    %c0_1 = arith.constant 0 : index
    %0 = vector.load %arg2[%c0, %c0_0, %c0_1] : memref<1x64x128xf32, #tpu.memory_space<vmem>>, vector<1x64x128xf32>
    %1 = vector.shape_cast %0 : vector<1x64x128xf32> to vector<64x128xf32>
    %2 = arith.truncf %1 : vector<64x128xf32> to vector<64x128xbf16>
    %c0_2 = arith.constant 0 : index
    %c0_3 = arith.constant 0 : index
    %3 = vector.load %arg3[%c0_2, %c0_3] : memref<80x64xbf16, #tpu.memory_space<vmem>>, vector<80x64xbf16>
    %cst = arith.constant dense<0.000000e+00> : vector<80x128xf32>
    %4 = tpu.matmul %3, %2, %cst {dimension_numbers = #tpu.dot_dimension_numbers<[1], [0], [0], [1], [0, 0, 1, 1], [], []>} : vector<80x64xbf16>, vector<64x128xbf16>, vector<80x128xf32> -> vector<80x128xf32>
    %c0_4 = arith.constant 0 : index
    %c0_5 = arith.constant 0 : index
    %5 = vector.load %arg4[%c0_4, %c0_5] : memref<80x1xf32, #tpu.memory_space<vmem>>, vector<80x1xf32>
    %6 = vector.broadcast %5 : vector<80x1xf32> to vector<80x128xf32>
    %7 = arith.addf %4, %6 : vector<80x128xf32>
    %8 = vector.extract_strided_slice %7 {offsets = [0, 0], sizes = [8, 128], strides = [1, 1]} : vector<80x128xf32> to vector<8x128xf32>
    %9 = arith.truncf %8 : vector<8x128xf32> to vector<8x128xbf16>
    %c0_6 = arith.constant 0 : index
    %c0_7 = arith.constant 0 : index
    %c0_8 = arith.constant 0 : index
    %10 = vector.load %arg5[%c0_6, %c0_7, %c0_8] : memref<1x8x128xbf16, #tpu.memory_space<vmem>>, vector<1x8x128xbf16>
    %11 = vector.shape_cast %10 : vector<1x8x128xbf16> to vector<8x128xbf16>
    %12 = vector.shape_cast %9 : vector<8x128xbf16> to vector<1x8x128xbf16>
    tpu.vector_store %arg5[%c0_6, %c0_7, %c0_8], %12 {strides = array<i32>} : memref<1x8x128xbf16, #tpu.memory_space<vmem>>, vector<1x8x128xbf16>,
    %13 = vector.extract_strided_slice %7 {offsets = [8, 0], sizes = [8, 128], strides = [1, 1]} : vector<80x128xf32> to vector<8x128xf32>
    %14 = arith.truncf %13 : vector<8x128xf32> to vector<8x128xbf16>
    %c0_9 = arith.constant 0 : index
    %c0_10 = arith.constant 0 : index
    %c0_11 = arith.constant 0 : index
    %15 = vector.load %arg6[%c0_9, %c0_10, %c0_11] : memref<1x8x128xbf16, #tpu.memory_space<vmem>>, vector<1x8x128xbf16>
    %16 = vector.shape_cast %15 : vector<1x8x128xbf16> to vector<8x128xbf16>
    %17 = vector.shape_cast %14 : vector<8x128xbf16> to vector<1x8x128xbf16>
    tpu.vector_store %arg6[%c0_9, %c0_10, %c0_11], %17 {strides = array<i32>} : memref<1x8x128xbf16, #tpu.memory_space<vmem>>, vector<1x8x128xbf16>,
    %18 = vector.extract_strided_slice %7 {offsets = [16, 0], sizes = [64, 128], strides = [1, 1]} : vector<80x128xf32> to vector<64x128xf32>
    %19 = arith.truncf %18 : vector<64x128xf32> to vector<64x128xbf16>
    %c0_12 = arith.constant 0 : index
    %c0_13 = arith.constant 0 : index
    %c0_14 = arith.constant 0 : index
    %20 = vector.load %arg7[%c0_12, %c0_13, %c0_14] : memref<1x64x128xbf16, #tpu.memory_space<vmem>>, vector<1x64x128xbf16>
    %21 = vector.shape_cast %20 : vector<1x64x128xbf16> to vector<64x128xbf16>
    %22 = vector.shape_cast %19 : vector<64x128xbf16> to vector<1x64x128xbf16>
    tpu.vector_store %arg7[%c0_12, %c0_13, %c0_14], %22 {strides = array<i32>} : memref<1x64x128xbf16, #tpu.memory_space<vmem>>, vector<1x64x128xbf16>,
    return
  }
  func.func @transform_0(%arg0: i32, %arg1: i32) -> (i32, i32, i32) {
    %c0_i32 = arith.constant 0 : i32
    %c0_i32_0 = arith.constant 0 : i32
    return %arg0, %c0_i32, %arg1 : i32, i32, i32
  }
  func.func @transform_1(%arg0: i32, %arg1: i32) -> (i32, i32) {
    %c0_i32 = arith.constant 0 : i32
    %c0_i32_0 = arith.constant 0 : i32
    %c0_i32_1 = arith.constant 0 : i32
    return %c0_i32, %c0_i32_0 : i32, i32
  }
  func.func @transform_2(%arg0: i32, %arg1: i32) -> (i32, i32) {
    %c0_i32 = arith.constant 0 : i32
    %c0_i32_0 = arith.constant 0 : i32
    %c0_i32_1 = arith.constant 0 : i32
    return %c0_i32, %c0_i32_0 : i32, i32
  }
  func.func @transform_3(%arg0: i32, %arg1: i32) -> (i32, i32, i32) {
    %c0_i32 = arith.constant 0 : i32
    %c0_i32_0 = arith.constant 0 : i32
    return %arg0, %c0_i32, %arg1 : i32, i32, i32
  }
  func.func @transform_4(%arg0: i32, %arg1: i32) -> (i32, i32, i32) {
    %c0_i32 = arith.constant 0 : i32
    %c0_i32_0 = arith.constant 0 : i32
    return %arg0, %c0_i32, %arg1 : i32, i32, i32
  }
  func.func @transform_5(%arg0: i32, %arg1: i32) -> (i32, i32, i32) {
    %c0_i32 = arith.constant 0 : i32
    %c0_i32_0 = arith.constant 0 : i32
    return %arg0, %c0_i32, %arg1 : i32, i32, i32
  }
}

</mosaic_0001>

<llo_original>
// kernel: tpu_custom_call.1
$region0: #{tpu_custom_call.1}
  #allocation0 [shape = 'u32[]', space=smem, size = 0x4, offset = 0x4, fixed_abs, tag = 'smem constant byte address 0x4 - core index']
  #allocation1 [shape = 'u32[144,128]{1,0:T(1,128)}', space=vmem, size = 0x12000, scoped, tag = 'internal scratch']
  %s0 = inlined_call_operand.hbm [shape: f32[2,64,384], index: 0, kind: input, shape index: {}]
  %s1 = inlined_call_operand.vmem [shape: bf16[80,64], index: 1, kind: input, shape index: {}]
  %s2 = inlined_call_operand.vmem [shape: f32[80,1], index: 2, kind: input, shape index: {}]
  %s3 = inlined_call_operand.hbm [shape: bf16[2,8,384], index: 3, kind: output, shape index: {0}]
  %s4 = inlined_call_operand.hbm [shape: bf16[2,8,384], index: 4, kind: output, shape index: {1}]
  %s5 = inlined_call_operand.hbm [shape: bf16[2,64,384], index: 5, kind: output, shape index: {2}]
  %6 = xla_tuple %s3, %s4, %s5
  %s7 = sld [smem:[#allocation0]]
  $region65: #{tpu_custom_call.1} parent=0
    _
  %s9 = ssub.s32 1, %s7
  %s10 = scalar_select 0, %s9, %s7
  $region1: #{tpu_custom_call.1} parent=0
    #allocation2 [shape = 'u8[65536]{0}', space=vmem, size = 0x10000, scoped, tag = 'input window, operand 0']
    #allocation3 [shape = 's32[2]{0}', space=sflag, size = 0x8, scoped, tag = 'scoped memory for tpu_custom_call.1']
    #allocation4 [shape = 's32[2]{0}', space=sflag, size = 0x8, scoped, tag = 'scoped memory for tpu_custom_call.1']
    #allocation5 [shape = 'u8[4096]{0}', space=vmem, size = 0x1000, scoped, tag = 'output window, operand 0']
    #allocation6 [shape = 'u8[4096]{0}', space=vmem, size = 0x1000, scoped, tag = 'output window, operand 1']
    #allocation7 [shape = 's32[2]{0}', space=sflag, size = 0x8, scoped, tag = 'scoped memory for tpu_custom_call.1']
    #allocation8 [shape = 'u8[32768]{0}', space=vmem, size = 0x8000, scoped, tag = 'output window, operand 2']
    %11 = vsyncpa [#allocation3], 0
    %s12 = scalar_lea.sflag [#allocation3], 1
    %13 = vsyncpa %s12, 0
    %14 = vsyncpa [#allocation4], 0
    %s15 = scalar_lea.sflag [#allocation4], 1
    %16 = vsyncpa %s15, 0
    %17 = vsyncpa [#allocation7], 0
    %s18 = scalar_lea.sflag [#allocation7], 1
    %19 = vsyncpa %s18, 0
    loop: start=0, step=1, limit=8
    $region2: #{tpu_custom_call.1} parent=1 // loop_pre_header
      _
    $region3: #{tpu_custom_call.1} parent=1 // loop_header
      %s21 = sphi 0, %s25
      %p22 = scmp.ge.s32.totalorder %s21, 8
      %s28 = sphi 0, %s40
      %s29 = sphi 0, %s36
      %s30 = sphi 0, %s28
      %s31 = sphi 0, %s29
      %s32 = sphi 0, %s30
      %s33 = sphi 0, %s31
      %s45 = sphi 0, %s47
      %s48 = sphi 0, %s45
      %s49 = sphi 0, %s48
      %s65 = sphi 0, %s49
      %s69 = sphi 0, %s69
      %s71 = sphi 0, %s69
      %s72 = sphi 0, %s71
      %s86 = sphi 0, %s72
      %s90 = sphi 0, %s90
      %s92 = sphi 0, %s90
      %s93 = sphi 0, %s92
      %s107 = sphi 0, %s93
      %s115 = sphi 0, %s117
      %s118 = sphi 0, %s115
      %s119 = sphi 0, %s118
      %s135 = sphi 0, %s119
      %s143 = sphi 0, %s145
      %s146 = sphi 0, %s143
      %s147 = sphi 0, %s146
      %s163 = sphi 0, %s147
      %s171 = sphi 0, %s173
      %s174 = sphi 0, %s171
      %s175 = sphi 0, %s174
      %s191 = sphi 0, %s175
    $region4: #{tpu_custom_call.1} parent=1 // loop_header_branch
      %24 = sbr.rel (%p22) target = $region8
    $region5: #{tpu_custom_call.1} parent=1 // loop_body
      %s26 = ssub.s32 %s21, 1
      %s27 = ssub.s32 %s21, 2
      %s34 = sadd.s32 1, %s29
      %p35 = scmp.ge.s32.totalorder %s34, 3
      %s36 = scalar_select %p35, 0, %s34
      %s37 = sadd.s32 1, %s28
      %s38 = scalar_select %p35, %s37, %s28
      %p39 = scmp.ge.s32.totalorder %s38, 2
      %s40 = scalar_select %p39, 0, %s38
      %s41 = ssub.s32 %s28, %s40
      %s42 = ssub.s32 %s29, %s36
      %s43 = sor.u32 %s41, %s42
      %p44 = scmp.eq.s32.totalorder %s43, 0
      %s46 = sadd.s32 %s45, 1
      %s47 = scalar_select %p44, %s45, %s46
      %p50 = pneg %p44
      %p51 = scmp.eq.s32.totalorder %s21, 5
      %p52 = por %p50, %p51
      %p53 = scmp.ne.s32.totalorder %s45, %s48
      %p54 = scmp.eq.s32.totalorder %s21, 0
      %p55 = por %p53, %p54
      %p56 = scmp.ne.s32.totalorder %s45, %s48
      %p57 = scmp.eq.s32.totalorder %s26, 5
      %p58 = por %p56, %p57
      %p59 = scmp.ne.s32.totalorder %s48, %s49
      %p60 = scmp.eq.s32.totalorder %s26, 0
      %p61 = por %p59, %p60
      %p62 = scmp.ne.s32.totalorder %s48, %s49
      %p63 = scmp.eq.s32.totalorder %s27, 5
      %p64 = por %p62, %p63
      %p66 = scmp.ne.s32.totalorder %s49, %s65
      %p67 = scmp.eq.s32.totalorder %s27, 0
      %p68 = por %p66, %p67
      %s70 = sadd.s32 %s69, 1
      %p73 = scmp.eq.s32.totalorder %s21, 5
      %p74 = scmp.ne.s32.totalorder %s69, %s71
      %p75 = scmp.eq.s32.totalorder %s21, 0
      %p76 = por %p74, %p75
      %p77 = scmp.ne.s32.totalorder %s69, %s71
      %p78 = scmp.eq.s32.totalorder %s26, 5
      %p79 = por %p77, %p78
      %p80 = scmp.ne.s32.totalorder %s71, %s72
      %p81 = scmp.eq.s32.totalorder %s26, 0
      %p82 = por %p80, %p81
      %p83 = scmp.ne.s32.totalorder %s71, %s72
      %p84 = scmp.eq.s32.totalorder %s27, 5
      %p85 = por %p83, %p84
      %p87 = scmp.ne.s32.totalorder %s72, %s86
      %p88 = scmp.eq.s32.totalorder %s27, 0
      %p89 = por %p87, %p88
      %s91 = sadd.s32 %s90, 1
      %p94 = scmp.eq.s32.totalorder %s21, 5
      %p95 = scmp.ne.s32.totalorder %s90, %s92
      %p96 = scmp.eq.s32.totalorder %s21, 0
      %p97 = por %p95, %p96
      %p98 = scmp.ne.s32.totalorder %s90, %s92
      %p99 = scmp.eq.s32.totalorder %s26, 5
      %p100 = por %p98, %p99
      %p101 = scmp.ne.s32.totalorder %s92, %s93
      %p102 = scmp.eq.s32.totalorder %s26, 0
      %p103 = por %p101, %p102
      %p104 = scmp.ne.s32.totalorder %s92, %s93
      %p105 = scmp.eq.s32.totalorder %s27, 5
      %p106 = por %p104, %p105
      %p108 = scmp.ne.s32.totalorder %s93, %s107
      %p109 = scmp.eq.s32.totalorder %s27, 0
      %p110 = por %p108, %p109
      %s111 = ssub.s32 %s28, %s40
      %s112 = ssub.s32 %s29, %s36
      %s113 = sor.u32 %s111, %s112
      %p114 = scmp.eq.s32.totalorder %s113, 0
      %s116 = sadd.s32 %s115, 1
      %s117 = scalar_select %p114, %s115, %s116
      %p120 = pneg %p114
      %p121 = scmp.eq.s32.totalorder %s21, 5
      %p122 = por %p120, %p121
      %p123 = scmp.ne.s32.totalorder %s115, %s118
      %p124 = scmp.eq.s32.totalorder %s21, 0
      %p125 = por %p123, %p124
      %p126 = scmp.ne.s32.totalorder %s115, %s118
      %p127 = scmp.eq.s32.totalorder %s26, 5
      %p128 = por %p126, %p127
      %p129 = scmp.ne.s32.totalorder %s118, %s119
      %p130 = scmp.eq.s32.totalorder %s26, 0
      %p131 = por %p129, %p130
      %p132 = scmp.ne.s32.totalorder %s118, %s119
      %p133 = scmp.eq.s32.totalorder %s27, 5
      %p134 = por %p132, %p133
      %p136 = scmp.ne.s32.totalorder %s119, %s135
      %p137 = scmp.eq.s32.totalorder %s27, 0
      %p138 = por %p136, %p137
      %s139 = ssub.s32 %s28, %s40
      %s140 = ssub.s32 %s29, %s36
      %s141 = sor.u32 %s139, %s140
      %p142 = scmp.eq.s32.totalorder %s141, 0
      %s144 = sadd.s32 %s143, 1
      %s145 = scalar_select %p142, %s143, %s144
      %p148 = pneg %p142
      %p149 = scmp.eq.s32.totalorder %s21, 5
      %p150 = por %p148, %p149
      %p151 = scmp.ne.s32.totalorder %s143, %s146
      %p152 = scmp.eq.s32.totalorder %s21, 0
      %p153 = por %p151, %p152
      %p154 = scmp.ne.s32.totalorder %s143, %s146
      %p155 = scmp.eq.s32.totalorder %s26, 5
      %p156 = por %p154, %p155
      %p157 = scmp.ne.s32.totalorder %s146, %s147
      %p158 = scmp.eq.s32.totalorder %s26, 0
      %p159 = por %p157, %p158
      %p160 = scmp.ne.s32.totalorder %s146, %s147
      %p161 = scmp.eq.s32.totalorder %s27, 5
      %p162 = por %p160, %p161
      %p164 = scmp.ne.s32.totalorder %s147, %s163
      %p165 = scmp.eq.s32.totalorder %s27, 0
      %p166 = por %p164, %p165
      %s167 = ssub.s32 %s28, %s40
      %s168 = ssub.s32 %s29, %s36
      %s169 = sor.u32 %s167, %s168
      %p170 = scmp.eq.s32.totalorder %s169, 0
      %s172 = sadd.s32 %s171, 1
      %s173 = scalar_select %p170, %s171, %s172
      %p176 = pneg %p170
      %p177 = scmp.eq.s32.totalorder %s21, 5
      %p178 = por %p176, %p177
      %p179 = scmp.ne.s32.totalorder %s171, %s174
      %p180 = scmp.eq.s32.totalorder %s21, 0
      %p181 = por %p179, %p180
      %p182 = scmp.ne.s32.totalorder %s171, %s174
      %p183 = scmp.eq.s32.totalorder %s26, 5
      %p184 = por %p182, %p183
      %p185 = scmp.ne.s32.totalorder %s174, %s175
      %p186 = scmp.eq.s32.totalorder %s26, 0
      %p187 = por %p185, %p186
      %p188 = scmp.ne.s32.totalorder %s174, %s175
      %p189 = scmp.eq.s32.totalorder %s27, 5
      %p190 = por %p188, %p189
      %p192 = scmp.ne.s32.totalorder %s175, %s191
      %p193 = scmp.eq.s32.totalorder %s27, 0
      %p194 = por %p192, %p193
      %p195 = scmp.le.s32.totalorder 1, %s21
      %p196 = scmp.lt.s32.totalorder %s21, 7
      %p197 = pnand %p195, %p196
      %p198 = pneg %p197
      // Predicated region
      $region9: #{tpu_custom_call.1} parent=5 // pred_check
        _
      $region10: #{tpu_custom_call.1} parent=5 // pred_check_branch
        %200 = sbr.rel (%p197) target = $region12
      $region11: #{tpu_custom_call.1} parent=5 // pred_region
        %s201 = ssub.s32 %s21, 1
        // Predicated region
        $region13: #{tpu_custom_call.1} parent=11 // pred_check
          %p202 = pneg %p82
        $region14: #{tpu_custom_call.1} parent=11 // pred_check_branch
          %204 = sbr.rel (%p202) target = $region16
        $region15: #{tpu_custom_call.1} parent=11 // pred_region
          _
        $region16: #{tpu_custom_call.1} parent=11 // pred_fallthru
          _
        // Predicated region
        $region17: #{tpu_custom_call.1} parent=11 // pred_check
          %p205 = pneg %p103
        $region18: #{tpu_custom_call.1} parent=11 // pred_check_branch
          %207 = sbr.rel (%p205) target = $region20
        $region19: #{tpu_custom_call.1} parent=11 // pred_region
          _
        $region20: #{tpu_custom_call.1} parent=11 // pred_fallthru
          _
      $region12: #{tpu_custom_call.1} parent=5 // pred_fallthru
        _
      %p208 = scmp.lt.s32.totalorder %s21, 6
      // Predicated region
      $region21: #{tpu_custom_call.1} parent=5 // pred_check
        %p209 = pneg %p208
      $region22: #{tpu_custom_call.1} parent=5 // pred_check_branch
        %211 = sbr.rel (%p209) target = $region24
      $region23: #{tpu_custom_call.1} parent=5 // pred_region
        // Predicated region
        $region25: #{tpu_custom_call.1} parent=23 // pred_check
          %p212 = pneg %p55
        $region26: #{tpu_custom_call.1} parent=23 // pred_check_branch
          %214 = sbr.rel (%p212) target = $region28
        $region27: #{tpu_custom_call.1} parent=23 // pred_region
          %s215 = sand.u32 %s45, 1
          %s216 = scalar_lea.sflag [#allocation3], %s215
          %s217 = sand.u32 %s45, 1
          %s218 = smul.addr %s217, 64
          %s219 = scalar_lea.vmem [#allocation2], %s218
          %s221 = ssub.s32 1024, 1024
          %222 = vsyncadd %s216, %s221
          %s223 = smul.addr %s28, 24
          %s224 = sadd.s32 %s29, %s223
          %s225 = smul.addr %s224, 128
          %s226 = scalar_lea.hbm %s0, %s225
          %s227 = sshll.u32 %s219, 4
          %s228 = int_to_ptr.vmem [resolvable:$true] %s227
          %233 = dma.hbm_to_vmem [thread:$0]  %s226, 1024, %s228, %s216, 384, 128, 8
        $region28: #{tpu_custom_call.1} parent=23 // pred_fallthru
          _
      $region24: #{tpu_custom_call.1} parent=5 // pred_fallthru
        _
      %p234 = scmp.le.s32.totalorder 1, %s21
      %p235 = scmp.lt.s32.totalorder %s21, 7
      %p236 = pnand %p234, %p235
      %p237 = pneg %p236
      // Predicated region
      $region29: #{tpu_custom_call.1} parent=5 // pred_check
        _
      $region30: #{tpu_custom_call.1} parent=5 // pred_check_branch
        %239 = sbr.rel (%p236) target = $region32
      $region31: #{tpu_custom_call.1} parent=5 // pred_region
        %s240 = ssub.s32 %s21, 1
        %s241 = sand.u32 %s48, 1
        %s242 = scalar_lea.sflag [#allocation3], %s241
        %s243 = sand.u32 %s48, 1
        %s244 = smul.addr %s243, 64
        %s245 = scalar_lea.vmem [#allocation2], %s244
        // Predicated region
        $region33: #{tpu_custom_call.1} parent=31 // pred_check
          %p246 = pneg %p61
        $region34: #{tpu_custom_call.1} parent=31 // pred_check_branch
          %248 = sbr.rel (%p246) target = $region36
        $region35: #{tpu_custom_call.1} parent=31 // pred_region
          %249 = dma.done %s242, 1024
        $region36: #{tpu_custom_call.1} parent=31 // pred_fallthru
          _
        %s250 = sand.u32 %s48, 1
        %s251 = scalar_lea.sflag [#allocation3], %s250
        %s252 = sand.u32 %s48, 1
        %s253 = smul.addr %s252, 64
        %s254 = scalar_lea.vmem [#allocation2], %s253
        %p255 = pneg %p61
        %p256 = pneg %p58
        %p257 = pneg %p82
        %p258 = pneg %p79
        %p259 = pneg %p103
        %p260 = pneg %p100
        %p261 = pneg %p131
        %p262 = pneg %p128
        %s263 = sand.u32 %s118, 1
        %s264 = scalar_lea.sflag [#allocation4], %s263
        %s265 = sand.u32 %s118, 1
        %s266 = smul.addr %s265, 4
        %s267 = scalar_lea.vmem [#allocation5], %s266
        %p268 = pneg %p159
        %p269 = pneg %p156
        %s270 = sand.u32 %s26, 1
        %s271 = scalar_lea.sflag [#allocation7], %s270
        %s272 = sand.u32 %s146, 1
        %s273 = smul.addr %s272, 4
        %s274 = scalar_lea.vmem [#allocation6], %s273
        %p275 = pneg %p187
        %p276 = pneg %p184
        %s277 = sand.u32 %s26, 1
        %s278 = scalar_lea.sflag [#allocation7], %s277
        %s279 = sand.u32 %s174, 1
        %s280 = smul.addr %s279, 32
        %s281 = scalar_lea.vmem [#allocation8], %s280
        %v283 = vld [vmem:[%s245] sm:$0xff]
        %v284 = vld [vmem:[%s245 + $0x8] sm:$0xff]
        %v285 = vld [vmem:[%s245 + $0x10] sm:$0xff]
        %v286 = vld [vmem:[%s245 + $0x18] sm:$0xff]
        %v287 = vld [vmem:[%s245 + $0x20] sm:$0xff]
        %v288 = vld [vmem:[%s245 + $0x28] sm:$0xff]
        %v289 = vld [vmem:[%s245 + $0x30] sm:$0xff]
        %v290 = vld [vmem:[%s245 + $0x38] sm:$0xff]
        %v291 = vpack.c.bf16 %v284, %v283
        %v292 = vpack.c.bf16 %v286, %v285
        %v293 = vpack.c.bf16 %v288, %v287
        %v294 = vpack.c.bf16 %v290, %v289
        %v295 = vld [vmem:[%s1] sm:$0xf]
        %v296 = vld [vmem:[%s1 + $0x4] sm:$0xf]
        %v297 = vld [vmem:[%s1 + $0x8] sm:$0xf]
        %v298 = vld [vmem:[%s1 + $0xc] sm:$0xf]
        %v299 = vld [vmem:[%s1 + $0x10] sm:$0xf]
        %v300 = vld [vmem:[%s1 + $0x14] sm:$0xf]
        %v301 = vld [vmem:[%s1 + $0x18] sm:$0xf]
        %v302 = vld [vmem:[%s1 + $0x1c] sm:$0xf]
        %v303 = vld [vmem:[%s1 + $0x20] sm:$0xf]
        %v304 = vld [vmem:[%s1 + $0x24] sm:$0xf]
        %v305 = vld [vmem:[%s2] sm:$0xff]
        %v306 = vld [vmem:[%s2 + $0x8] sm:$0xff]
        %v307 = vld [vmem:[%s2 + $0x10] sm:$0xff]
        %v308 = vld [vmem:[%s2 + $0x18] sm:$0xff]
        %v309 = vld [vmem:[%s2 + $0x20] sm:$0xff]
        %v310 = vld [vmem:[%s2 + $0x28] sm:$0xff]
        %v311 = vld [vmem:[%s2 + $0x30] sm:$0xff]
        %v312 = vld [vmem:[%s2 + $0x38] sm:$0xff]
        %v313 = vld [vmem:[%s2 + $0x40] sm:$0xff]
        %v314 = vld [vmem:[%s2 + $0x48] sm:$0xff]
        %316 = vset.pattern.permute.xlu0 0
        %317 = vperm.xlu0 %316, %v305
        %v318 = vpop.permute.xlu0 %317
        %321 = vset.pattern.permute.xlu0 0
        %322 = vperm.xlu0 %321, %v306
        %v323 = vpop.permute.xlu0 %322
        %326 = vset.pattern.permute.xlu0 0
        %327 = vperm.xlu0 %326, %v307
        %v328 = vpop.permute.xlu0 %327
        %331 = vset.pattern.permute.xlu0 0
        %332 = vperm.xlu0 %331, %v308
        %v333 = vpop.permute.xlu0 %332
        %336 = vset.pattern.permute.xlu0 0
        %337 = vperm.xlu0 %336, %v309
        %v338 = vpop.permute.xlu0 %337
        %341 = vset.pattern.permute.xlu0 0
        %342 = vperm.xlu0 %341, %v310
        %v343 = vpop.permute.xlu0 %342
        %346 = vset.pattern.permute.xlu0 0
        %347 = vperm.xlu0 %346, %v311
        %v348 = vpop.permute.xlu0 %347
        %351 = vset.pattern.permute.xlu0 0
        %352 = vperm.xlu0 %351, %v312
        %v353 = vpop.permute.xlu0 %352
        %356 = vset.pattern.permute.xlu0 0
        %357 = vperm.xlu0 %356, %v313
        %v358 = vpop.permute.xlu0 %357
        %361 = vset.pattern.permute.xlu0 0
        %362 = vperm.xlu0 %361, %v314
        %v363 = vpop.permute.xlu0 %362
        %v375 = vunpack.c.l.b16 %v295
        %v376 = vunpack.c.l.b16 %v296
        %v377 = vunpack.c.l.b16 %v297
        %v378 = vunpack.c.l.b16 %v298
        %v379 = vunpack.c.l.b16 %v299
        %v380 = vunpack.c.l.b16 %v300
        %v381 = vunpack.c.l.b16 %v301
        %v382 = vunpack.c.l.b16 %v302
        %v383 = vunpack.c.l.b16 %v303
        %v384 = vunpack.c.l.b16 %v304
        %v385 = vpack.c.b16 %v376, %v375
        %v386 = vpack.c.b16 %v378, %v377
        %v387 = vpack.c.b16 %v380, %v379
        %v388 = vpack.c.b16 %v382, %v381
        %v389 = vpack.c.b16 %v384, %v383
        %vm390 = vcmask 523264
        %v392 = vsel %vm390, %v385, 0
        %v395 = vsel %vm390, %v386, 0
        %v398 = vsel %vm390, %v387, 0
        %v401 = vsel %vm390, %v388, 0
        %v404 = vsel %vm390, %v389, 0
        %406 = vmatprep.subr.bf16.mxu0 0
        %407 = vmatpush1.bf16.msra.mxu0 %v291
        %408 = vmatprep.subr.bf16.mxu0 0
        %409 = vmatpush1.bf16.msra.mxu0 %v292
        %410 = vmatprep.subr.bf16.mxu0 0
        %411 = vmatpush1.bf16.msra.mxu0 %v293
        %412 = vmatprep.subr.bf16.mxu0 0
        %413 = vmatpush1.bf16.msra.mxu0 %v294
        %414 = vmatprep.subr.bf16.mxu0 0
        %415 = vmatpush1.bf16.msra.mxu0 0
        %416 = vmatprep.subr.bf16.mxu0 0
        %417 = vmatpush1.bf16.msra.mxu0 0
        %418 = vmatprep.subr.bf16.mxu0 0
        %419 = vmatpush1.bf16.msra.mxu0 0
        %420 = vmatprep.subr.bf16.mxu0 0
        %421 = vmatpush1.bf16.msra.mxu0 0
        %422 = vmatprep.subr.bf16.mxu0 0
        %423 = vmatpush1.bf16.msra.mxu0 0
        %424 = vmatprep.subr.bf16.mxu0 0
        %425 = vmatpush1.bf16.msra.mxu0 0
        %426 = vmatprep.subr.bf16.mxu0 0
        %427 = vmatpush1.bf16.msra.mxu0 0
        %428 = vmatprep.subr.bf16.mxu0 0
        %429 = vmatpush1.bf16.msra.mxu0 0
        %430 = vmatprep.subr.bf16.mxu0 0
        %431 = vmatpush1.bf16.msra.mxu0 0
        %432 = vmatprep.subr.bf16.mxu0 0
        %433 = vmatpush1.bf16.msra.mxu0 0
        %434 = vmatprep.subr.bf16.mxu0 0
        %435 = vmatpush1.bf16.msra.mxu0 0
        %436 = vmatprep.subr.bf16.mxu0 0
        %437 = vmatpush1.bf16.msra.mxu0 0
        %438 = vmatprep.mubr.bf16.mxu0 0
        %439 = vmatmul.mubr.bf16.gmra.mrb[0].mxu0 %v392
        %v440 = vpop.f32.mrb[0].mxu0
        %v441 = vadd.f32 %v318, %v440
        %v442 = vpop.f32.mrb[0].mxu0
        %v443 = vpop.f32.mrb[0].mxu0
        %v444 = vadd.f32 %v323, %v443
        %v445 = vpop.f32.mrb[0].mxu0
        %446 = vmatprep.mubr.bf16.mxu0 0
        %447 = vmatmul.mubr.bf16.gmra.mrb[0].mxu0 %v395
        %v448 = vpop.f32.mrb[0].mxu0
        %v449 = vadd.f32 %v328, %v448
        %v450 = vpop.f32.mrb[0].mxu0
        %v451 = vpop.f32.mrb[0].mxu0
        %v452 = vadd.f32 %v333, %v451
        %v453 = vpop.f32.mrb[0].mxu0
        %454 = vmatprep.mubr.bf16.mxu0 0
        %455 = vmatmul.mubr.bf16.gmra.mrb[0].mxu0 %v398
        %v456 = vpop.f32.mrb[0].mxu0
        %v457 = vadd.f32 %v338, %v456
        %v458 = vpop.f32.mrb[0].mxu0
        %v459 = vpop.f32.mrb[0].mxu0
        %v460 = vadd.f32 %v343, %v459
        %v461 = vpop.f32.mrb[0].mxu0
        %462 = vmatprep.mubr.bf16.mxu0 0
        %463 = vmatmul.mubr.bf16.gmra.mrb[0].mxu0 %v401
        %v464 = vpop.f32.mrb[0].mxu0
        %v465 = vadd.f32 %v348, %v464
        %v466 = vpop.f32.mrb[0].mxu0
        %v467 = vpop.f32.mrb[0].mxu0
        %v468 = vadd.f32 %v353, %v467
        %v469 = vpop.f32.mrb[0].mxu0
        %470 = vmatprep.mubr.bf16.mxu0 0
        %471 = vmatmul.mubr.bf16.gmra.mrb[0].mxu0 %v404
        %v472 = vpop.f32.mrb[0].mxu0
        %v473 = vadd.f32 %v358, %v472
        %v474 = vpop.f32.mrb[0].mxu0
        %v475 = vpop.f32.mrb[0].mxu0
        %v476 = vadd.f32 %v363, %v475
        %v477 = vpop.f32.mrb[0].mxu0
        %478 = vdwg.mxu0
        %v479 = vpack.c.bf16 %v441, %v441
        %480 = vst [vmem:[%s267] sm:$0xf] %v479
        %v481 = vpack.c.bf16 %v444, %v444
        %482 = vst [vmem:[%s274] sm:$0xf] %v481
        %v483 = vpack.c.bf16 %v452, %v449
        %v484 = vpack.c.bf16 %v460, %v457
        %v485 = vpack.c.bf16 %v468, %v465
        %v486 = vpack.c.bf16 %v476, %v473
        %v491 = vunpack.c.l.b16 %v483
        %v492 = vunpack.c.h.b16 %v483
        %v493 = vunpack.c.l.b16 %v484
        %v494 = vunpack.c.h.b16 %v484
        %v495 = vunpack.c.l.b16 %v485
        %v496 = vunpack.c.h.b16 %v485
        %v497 = vunpack.c.l.b16 %v486
        %v498 = vunpack.c.h.b16 %v486
        %v499 = vpack.c.b16 %v491, %v491
        %v500 = vpack.c.b16 %v492, %v492
        %v501 = vpack.c.b16 %v493, %v493
        %v502 = vpack.c.b16 %v494, %v494
        %v503 = vpack.c.b16 %v495, %v495
        %v504 = vpack.c.b16 %v496, %v496
        %v505 = vpack.c.b16 %v497, %v497
        %v506 = vpack.c.b16 %v498, %v498
        %515 = vst [vmem:[%s281] sm:$0xf] %v499
        %516 = vst [vmem:[%s281 + $0x4] sm:$0xf] %v500
        %517 = vst [vmem:[%s281 + $0x8] sm:$0xf] %v501
        %518 = vst [vmem:[%s281 + $0xc] sm:$0xf] %v502
        %519 = vst [vmem:[%s281 + $0x10] sm:$0xf] %v503
        %520 = vst [vmem:[%s281 + $0x14] sm:$0xf] %v504
        %521 = vst [vmem:[%s281 + $0x18] sm:$0xf] %v505
        %522 = vst [vmem:[%s281 + $0x1c] sm:$0xf] %v506
        %s523 = sand.u32 %s118, 1
        %s524 = scalar_lea.sflag [#allocation4], %s523
        %s525 = sand.u32 %s118, 1
        %s526 = smul.addr %s525, 4
        %s527 = scalar_lea.vmem [#allocation5], %s526
        %s528 = sand.u32 %s26, 1
        %s529 = scalar_lea.sflag [#allocation7], %s528
        %s530 = sand.u32 %s146, 1
        %s531 = smul.addr %s530, 4
        %s532 = scalar_lea.vmem [#allocation6], %s531
        %s533 = sand.u32 %s26, 1
        %s534 = scalar_lea.sflag [#allocation7], %s533
        %s535 = sand.u32 %s174, 1
        %s536 = smul.addr %s535, 32
        %s537 = scalar_lea.vmem [#allocation8], %s536
        // Predicated region
        $region37: #{tpu_custom_call.1} parent=31 // pred_check
          %p538 = pneg %p128
        $region38: #{tpu_custom_call.1} parent=31 // pred_check_branch
          %540 = sbr.rel (%p538) target = $region40
        $region39: #{tpu_custom_call.1} parent=31 // pred_region
          %s542 = ssub.s32 64, 64
          %543 = vsyncadd %s524, %s542
          %s544 = smul.addr %s30, 3
          %s545 = sadd.s32 %s31, %s544
          %s546 = smul.addr %s545, 64
          %s547 = scalar_lea.hbm %s3, %s546
          %s549 = sshll.u32 %s527, 4
          %s550 = int_to_ptr.vmem [resolvable:$true] %s549
          %552 = dma.vmem_to_hbm [thread:$0]  %s550, 64, %s547, %s524
        $region40: #{tpu_custom_call.1} parent=31 // pred_fallthru
          _
        // Predicated region
        $region41: #{tpu_custom_call.1} parent=31 // pred_check
          %p553 = pneg %p156
        $region42: #{tpu_custom_call.1} parent=31 // pred_check_branch
          %555 = sbr.rel (%p553) target = $region44
        $region43: #{tpu_custom_call.1} parent=31 // pred_region
          %s557 = ssub.s32 64, 64
          %558 = vsyncadd %s529, %s557
          %s559 = smul.addr %s30, 3
          %s560 = sadd.s32 %s31, %s559
          %s561 = smul.addr %s560, 64
          %s562 = scalar_lea.hbm %s4, %s561
          %s564 = sshll.u32 %s532, 4
          %s565 = int_to_ptr.vmem [resolvable:$true] %s564
          %567 = dma.vmem_to_hbm [thread:$0]  %s565, 64, %s562, %s529
        $region44: #{tpu_custom_call.1} parent=31 // pred_fallthru
          _
        // Predicated region
        $region45: #{tpu_custom_call.1} parent=31 // pred_check
          %p568 = pneg %p184
        $region46: #{tpu_custom_call.1} parent=31 // pred_check_branch
          %570 = sbr.rel (%p568) target = $region48
        $region47: #{tpu_custom_call.1} parent=31 // pred_region
          %s572 = ssub.s32 512, 512
          %573 = vsyncadd %s534, %s572
          %s574 = smul.addr %s30, 24
          %s575 = sadd.s32 %s31, %s574
          %s576 = smul.addr %s575, 64
          %s577 = scalar_lea.hbm %s5, %s576
          %s578 = sshll.u32 %s537, 4
          %s579 = int_to_ptr.vmem [resolvable:$true] %s578
          %584 = dma.vmem_to_hbm [thread:$0]  %s579, 512, %s577, %s534, 64, 192, 4
        $region48: #{tpu_custom_call.1} parent=31 // pred_fallthru
          _
      $region32: #{tpu_custom_call.1} parent=5 // pred_fallthru
        _
      %p585 = scmp.le.s32.totalorder 2, %s21
      // Predicated region
      $region49: #{tpu_custom_call.1} parent=5 // pred_check
        %p586 = pneg %p585
      $region50: #{tpu_custom_call.1} parent=5 // pred_check_branch
        %588 = sbr.rel (%p586) target = $region52
      $region51: #{tpu_custom_call.1} parent=5 // pred_region
        %s589 = ssub.s32 %s21, 2
        // Predicated region
        $region53: #{tpu_custom_call.1} parent=51 // pred_check
          %p590 = pneg %p134
        $region54: #{tpu_custom_call.1} parent=51 // pred_check_branch
          %592 = sbr.rel (%p590) target = $region56
        $region55: #{tpu_custom_call.1} parent=51 // pred_region
          %s593 = sand.u32 %s119, 1
          %s594 = scalar_lea.sflag [#allocation4], %s593
          %s595 = sand.u32 %s119, 1
          %s596 = smul.addr %s595, 4
          %s597 = scalar_lea.vmem [#allocation5], %s596
          %598 = dma.done %s594, 64
        $region56: #{tpu_custom_call.1} parent=51 // pred_fallthru
          _
        // Predicated region
        $region57: #{tpu_custom_call.1} parent=51 // pred_check
          %p599 = pneg %p162
        $region58: #{tpu_custom_call.1} parent=51 // pred_check_branch
          %601 = sbr.rel (%p599) target = $region60
        $region59: #{tpu_custom_call.1} parent=51 // pred_region
          %s602 = sand.u32 %s27, 1
          %s603 = scalar_lea.sflag [#allocation7], %s602
          %s604 = sand.u32 %s147, 1
          %s605 = smul.addr %s604, 4
          %s606 = scalar_lea.vmem [#allocation6], %s605
          %607 = dma.done %s603, 64
        $region60: #{tpu_custom_call.1} parent=51 // pred_fallthru
          _
        // Predicated region
        $region61: #{tpu_custom_call.1} parent=51 // pred_check
          %p608 = pneg %p190
        $region62: #{tpu_custom_call.1} parent=51 // pred_check_branch
          %610 = sbr.rel (%p608) target = $region64
        $region63: #{tpu_custom_call.1} parent=51 // pred_region
          %s611 = sand.u32 %s27, 1
          %s612 = scalar_lea.sflag [#allocation7], %s611
          %s613 = sand.u32 %s175, 1
          %s614 = smul.addr %s613, 32
          %s615 = scalar_lea.vmem [#allocation8], %s614
          %616 = dma.done %s612, 512
        $region64: #{tpu_custom_call.1} parent=51 // pred_fallthru
          _
      $region52: #{tpu_custom_call.1} parent=5 // pred_fallthru
        _
    $region6: #{tpu_custom_call.1} parent=1 // loop_footer
      %s25 = sadd.s32 1, %s21
    $region7: #{tpu_custom_call.1} parent=1 // loop_footer_branch
      %20 = sbr.rel target = $region3
    $region8: #{tpu_custom_call.1} parent=1 // loop_exit
      _
    %617 = vsyncpa [#allocation3], 1
    %s618 = scalar_lea.sflag [#allocation3], 1
    %619 = vsyncpa %s618, 1
    %620 = vsyncpa [#allocation4], 1
    %s621 = scalar_lea.sflag [#allocation4], 1
    %622 = vsyncpa %s621, 1
    %623 = vsyncpa [#allocation7], 1
    %s624 = scalar_lea.sflag [#allocation7], 1
    %625 = vsyncpa %s624, 1

</llo_original>
